<compile_context>
chip_gen: v6e
topology: v6e:2x2x1
jax: 0.10.0
libtpu: 0.0.40
codegen_flags: <defaults>
</compile_context>

<pallas_src>
import math

import jax
import jax.numpy as jnp
from jax import lax
from jax.experimental import pallas as pl
from jax.experimental.pallas import tpu as pltpu


# ----------------------------- kernel body ----------------------------------------------


def _make_kernel(*, scale, tl, has_mask, mask_full, store_attn):
    """Kernel body for one (batch, head, q-tile) grid step.

    Ref order: q, k, v, [mask], v_out, [a_out]
      q_ref: (TL, E)   k_ref: (S, E)   v_ref: (S, D)
      mask_ref: (L_pad, S) if mask_full else (TL, S)   (bool or int, nonzero == masked)
      v_out_ref: (TL, D)   a_out_ref: (TL, S)
    """

    def kernel(*refs):
        idx = 0
        q_ref = refs[idx]; idx += 1
        k_ref = refs[idx]; idx += 1
        v_ref = refs[idx]; idx += 1
        m_ref = None
        if has_mask:
            m_ref = refs[idx]; idx += 1
        v_out_ref = refs[idx]; idx += 1
        a_out_ref = refs[idx + 1 - 1] if store_attn else None
        if store_attn:
            a_out_ref = refs[idx]

        q = q_ref[...]
        k = k_ref[...]
        v = v_ref[...]

        # Fold the softmax scale into Q: TL*E multiplies instead of TL*S.
        q = (q.astype(jnp.float32) * scale).astype(q.dtype)

        # scores = einsum('le,se->ls'): native-dtype operands, f32 accumulation (MXU).
        s = lax.dot_general(q, k, (((1,), (1,)), ((), ())),
                            preferred_element_type=jnp.float32)          # (TL, S) f32

        if m_ref is not None:
            if mask_full:
                # Per-batch resident mask: slice this step's TL rows out of (L_pad, S).
                row0 = pl.multiple_of(pl.program_id(2) * tl, tl)
                m = m_ref[pl.ds(row0, tl), :]
            else:
                m = m_ref[...]
            mflag = m if m.dtype == jnp.bool_ else (m != 0)
            s = jnp.where(mflag, -jnp.inf, s)

        # Softmax over S.  Fully-masked rows yield NaN, same as the torch reference.
        m_max = jnp.max(s, axis=-1, keepdims=True)
        p = jnp.exp(s - m_max)
        denom = jnp.sum(p, axis=-1, keepdims=True)
        a = p * pl.reciprocal(denom, approx=True)
        # Masked entries are exactly 0 already (exp(-inf - finite_max) == 0).

        # Cast the probabilities to V's dtype once; reuse for the AV matmul and A store.
        a_lp = a.astype(v.dtype)
        v_out = jnp.dot(a_lp, v, preferred_element_type=jnp.float32)
        v_out_ref[...] = v_out.astype(v_out_ref.dtype)

        if a_out_ref is not None:
            if a_out_ref.dtype == a_lp.dtype:
                a_out_ref[...] = a_lp
            else:
                a_out_ref[...] = a.astype(a_out_ref.dtype)

    return kernel


# ----------------------------- hardware / tiling helpers --------------------------------


def _tpu_vmem_capacity():
    try:
        cap = int(pltpu.get_tpu_info().vmem_capacity_bytes)
        if cap > 0:
            return cap
    except Exception:
        pass
    try:
        kind = jax.devices()[0].device_kind.lower()
    except Exception:
        kind = ""
    return (64 << 20) if "v7" in kind else (128 << 20)


def _default_q_block_cap():
    # v5e: 128-class MXU + no bf16 VPU/EUP -> smaller query tiles; v6e/v7x: 256.
    try:
        kind = jax.devices()[0].device_kind.lower()
    except Exception:
        kind = ""
    return 128 if "v5" in kind else 256


def _round_up(x, m):
    return ((x + m - 1) // m) * m


def _choose_q_tiling(L, cap):
    """Returns (TL, L_pad) with TL a multiple of 8 that divides L_pad exactly."""
    if L <= cap:
        tl = _round_up(max(L, 8), 8)
        return tl, tl
    best = None
    for t in (256, 128, 64, 32):
        if t > cap:
            continue
        lp = _round_up(L, t)
        if best is None or lp < best[1] or (lp == best[1] and t > best[0]):
            best = (t, lp)
    if best is None:
        best = (cap, _round_up(L, cap))
    return best


# ----------------------------- public wrapper --------------------------------------------


def full_attention(queries, keys, values, attn_mask=None, *,
                   compute_attn=True, q_block=None):
    """Pallas TPU implementation of FullAttention.forward (dropout p = 0).

    queries: (B, L, H, E), keys: (B, S, H, E), values: (B, S, H, D),
    attn_mask: (B, L, S) bool/int (nonzero == masked) or None.
    Returns (V, A): V (B, L, H, D) and A (B, H, L, S) in the input dtype.
    If compute_attn=False, returns (V, None) and skips the A writeback entirely.
    """
    B, L, H, E = queries.shape
    _, S, _, D = values.shape
    scale = 1.0 / math.sqrt(E)
    out_dtype = queries.dtype
    in_b = jnp.dtype(queries.dtype).itemsize
    out_b = jnp.dtype(out_dtype).itemsize

    cap = q_block or _default_q_block_cap()
    TL, L_pad = _choose_q_tiling(L, cap)
    grid = (B, H, L_pad // TL)

    # Pad L so query tiles stay (8, 128)-legal and (TL, S) temporaries stay bounded.
    if L_pad != L:
        queries = jnp.pad(queries, ((0, 0), (0, L_pad - L), (0, 0), (0, 0)))
        if attn_mask is not None:
            attn_mask = jnp.pad(attn_mask, ((0, 0), (0, L_pad - L), (0, 0)))

    # Mask: avoid a full HBM convert pass when it is already 1 byte per element.
    has_mask = attn_mask is not None
    if has_mask and jnp.dtype(attn_mask.dtype).itemsize != 1:
        attn_mask = attn_mask.astype(jnp.int8)

    # Per-batch resident mask (fetched once per batch, sliced per q-tile in the kernel)
    # whenever the grid has several q-tiles and it is small enough to sit in VMEM.
    mask_full = (has_mask and (L_pad // TL > 1) and (TL % 32 == 0)
                 and (L_pad * S <= (4 << 20)))

    vmem_budget = int(_tpu_vmem_capacity() * 0.85)

    lane_dense = (E % 128 == 0) and (D % 128 == 0)
    if lane_dense:
        # No host transposes: view Q/K/V as (B, L, H*E)-style arrays and pick the head's
        # 128-aligned column block via the BlockSpec index map; write V the same way.
        q_in = queries.reshape(B, L_pad, H * E)
        k_in = keys.reshape(B, S, H * E)
        v_in = values.reshape(B, S, H * D)
        q_spec = pl.BlockSpec((None, TL, E), lambda b, h, l: (b, l, h))
        k_spec = pl.BlockSpec((None, S, E), lambda b, h, l: (b, 0, h))   # resident over l
        v_spec = pl.BlockSpec((None, S, D), lambda b, h, l: (b, 0, h))   # resident over l
        v_out_shape = jax.ShapeDtypeStruct((B, L_pad, H * D), out_dtype)
        v_out_spec = pl.BlockSpec((None, TL, D), lambda b, h, l: (b, l, h))
        finalize_v = lambda v_raw: v_raw.reshape(B, L_pad, H, D)
    else:
        # Small / unaligned heads: head-major transposes keep per-head blocks legal.
        q_in = jnp.transpose(queries, (0, 2, 1, 3))   # (B, H, L_pad, E)
        k_in = jnp.transpose(keys, (0, 2, 1, 3))      # (B, H, S, E)
        v_in = jnp.transpose(values, (0, 2, 1, 3))    # (B, H, S, D)
        q_spec = pl.BlockSpec((None, None, TL, E), lambda b, h, l: (b, h, l, 0))
        k_spec = pl.BlockSpec((None, None, S, E), lambda b, h, l: (b, h, 0, 0))
        v_spec = pl.BlockSpec((None, None, S, D), lambda b, h, l: (b, h, 0, 0))
        v_out_shape = jax.ShapeDtypeStruct((B, H, L_pad, D), out_dtype)
        v_out_spec = pl.BlockSpec((None, None, TL, D), lambda b, h, l: (b, h, l, 0))
        finalize_v = lambda v_raw: jnp.transpose(v_raw, (0, 2, 1, 3))

    in_specs = [q_spec, k_spec, v_spec]
    inputs = [q_in, k_in, v_in]
    if has_mask:
        if mask_full:
            in_specs.append(pl.BlockSpec((None, L_pad, S), lambda b, h, l: (b, 0, 0)))
        else:
            in_specs.append(pl.BlockSpec((None, TL, S), lambda b, h, l: (b, l, 0)))
        inputs.append(attn_mask)

    out_shapes = [v_out_shape]
    out_specs = [v_out_spec]
    if compute_attn:
        out_shapes.append(jax.ShapeDtypeStruct((B, H, L_pad, S), out_dtype))
        out_specs.append(pl.BlockSpec((None, None, TL, S), lambda b, h, l: (b, h, l, 0)))

    # VMEM request: double-buffered blocks + f32 softmax temporaries, capped to ~85% of
    # this generation's physical VMEM (v5e/v6e 128 MiB, v7x 64 MiB).
    kv_bytes = 2 * S * (E + D) * in_b
    mask_bytes = (2 * (L_pad * S if mask_full else TL * S)) if has_mask else 0
    vmem_est = (2 * TL * E * in_b + kv_bytes + mask_bytes
                + 2 * TL * D * out_b
                + (2 * TL * S * out_b if compute_attn else 0)
                + 4 * TL * S * 4 + (2 << 20))
    vmem_limit = int(min(max(vmem_est, 32 << 20), vmem_budget))

    kernel = _make_kernel(scale=scale, tl=TL, has_mask=has_mask,
                          mask_full=mask_full, store_attn=compute_attn)

    outs = pl.pallas_call(
        kernel,
        out_shape=tuple(out_shapes),
        grid_spec=pltpu.PrefetchScalarGridSpec(
            num_scalar_prefetch=0,
            grid=grid,
            in_specs=in_specs,
            out_specs=tuple(out_specs),
        ),
        compiler_params=pltpu.CompilerParams(
            dimension_semantics=("parallel", "parallel", "arbitrary"),
            vmem_limit_bytes=vmem_limit,
        ),
    )(*inputs)

    V = finalize_v(outs[0])
    if L_pad != L:
        V = V[:, :L]
    A = None
    if compute_attn:
        A = outs[1]
        if L_pad != L:
            A = A[:, :, :L, :]
    return V, A


# ----------------------------- reference & test ------------------------------------------


def _reference(queries, keys, values, attn_mask):
    E = queries.shape[-1]
    scale = 1.0 / math.sqrt(E)
    q = queries.astype(jnp.float32)
    k = keys.astype(jnp.float32)
    v = values.astype(jnp.float32)
    scores = jnp.einsum('blhe,bshe->bhls', q, k)
    if attn_mask is not None:
        m = attn_mask[:, None, :, :]
        scores = jnp.where(m, -jnp.inf, scores)
    A = jax.nn.softmax(scale * scores, axis=-1)
    if attn_mask is not None:
        A = jnp.where(attn_mask[:, None, :, :], 0.0, A)
    V = jnp.einsum('bhls,bshd->blhd', A, v)
    return V, A


def _check(queries, keys, values, attn_mask, atol, rtol, label, q_block=None):
    V, A = full_attention(queries, keys, values, attn_mask, q_block=q_block)
    jax.block_until_ready((V, A))
    V_ref, A_ref = _reference(queries, keys, values, attn_mask)
    V32 = V.astype(jnp.float32)
    A32 = A.astype(jnp.float32)
    assert V.shape == V_ref.shape and A.shape == A_ref.shape, label + ": shape mismatch"
    assert jnp.allclose(V32, V_ref, atol=atol, rtol=rtol), label + ": V mismatch"
    assert jnp.allclose(A32, A_ref, atol=atol, rtol=rtol), label + ": A mismatch"
    if attn_mask is not None:
        masked = attn_mask[:, None, :, :]
        assert bool(jnp.all(jnp.where(masked, A32, 0.0) == 0.0)), label + ": mask leak"


if __name__ == "__main__":
    root = jax.random.PRNGKey(0)
    keys_ = jax.random.split(root, 12)

    # Case 1: small unaligned heads (E=D=32) -> head-major fallback path, masked kernel.
    B, L, S, H, E, D = 2, 8, 8, 4, 32, 32
    q1 = jax.random.normal(keys_[0], (B, L, H, E), dtype=jnp.float32)
    k1 = jax.random.normal(keys_[1], (B, S, H, E), dtype=jnp.float32)
    v1 = jax.random.normal(keys_[2], (B, S, H, D), dtype=jnp.float32)
    m1 = jax.random.bernoulli(keys_[3], 0.3, (B, L, S))
    m1 = m1 & ~jnp.eye(L, S, dtype=bool)[None]          # keep diagonal unmasked
    _check(q1, k1, v1, m1, atol=3e-2, rtol=3e-2, label="f32/masked")

    # Case 2: same tensors, attn_mask=None -> specialized mask-free kernel.
    _check(q1, k1, v1, None, atol=3e-2, rtol=3e-2, label="f32/no-mask")

    # Case 3: lane-dense heads (E=D=128), bf16 inputs -> no-transpose path, bf16 A/V.
    B, L, S, H, E, D = 2, 16, 16, 2, 128, 128
    q3 = jax.random.normal(keys_[4], (B, L, H, E), dtype=jnp.bfloat16)
    k3 = jax.random.normal(keys_[5], (B, S, H, E), dtype=jnp.bfloat16)
    v3 = jax.random.normal(keys_[6], (B, S, H, D), dtype=jnp.bfloat16)
    m3 = jax.random.bernoulli(keys_[7], 0.3, (B, L, S))
    m3 = m3 & ~jnp.eye(L, S, dtype=bool)[None]
    _check(q3, k3, v3, m3, atol=6e-2, rtol=6e-2, label="bf16/masked")

    # Case 3b: V-only variant (skips the A writeback entirely).
    V_only, A_none = full_attention(q3, k3, v3, m3, compute_attn=False)
    jax.block_until_ready(V_only)
    V_ref3, _ = _reference(q3, k3, v3, m3)
    assert A_none is None
    assert jnp.allclose(V_only.astype(jnp.float32), V_ref3, atol=6e-2, rtol=6e-2), \
        "bf16/V-only: V mismatch"

    # Case 4: L=40 not tile-aligned + forced small q_block -> host-side L padding,
    # multi-l grid and the per-batch resident mask (sliced in-kernel with pl.ds).
    B, L, S, H, E, D = 2, 40, 64, 2, 64, 64
    q4 = jax.random.normal(keys_[8], (B, L, H, E), dtype=jnp.float32)
    k4 = jax.random.normal(keys_[9], (B, S, H, E), dtype=jnp.float32)
    v4 = jax.random.normal(keys_[10], (B, S, H, D), dtype=jnp.float32)
    m4 = jax.random.bernoulli(keys_[11], 0.3, (B, L, S))
    m4 = m4 & ~jnp.eye(L, S, dtype=bool)[None]
    _check(q4, k4, v4, m4, atol=3e-2, rtol=3e-2, label="f32/padded+resident-mask",
           q_block=32)

    print("KERNEL_OK")
</pallas_src>

<mosaic_0001>
module attributes {stable_mosaic.version = 11 : i64} {
  func.func @kernel(%arg0: i32, %arg1: i32, %arg2: i32, %arg3: memref<1x1x8x32xf32, #tpu.memory_space<vmem>>, %arg4: memref<1x1x8x32xf32, #tpu.memory_space<vmem>>, %arg5: memref<1x1x8x32xf32, #tpu.memory_space<vmem>>, %arg6: memref<1x8x8xi32, #tpu.memory_space<vmem>>, %arg7: memref<1x1x8x32xf32, #tpu.memory_space<vmem>>, %arg8: memref<1x1x8x8xf32, #tpu.memory_space<vmem>>) attributes {dimension_semantics = [#tpu.dimension_semantics<parallel>, #tpu.dimension_semantics<parallel>, #tpu.dimension_semantics<arbitrary>], iteration_bounds = array<i64: 2, 4, 1>, scalar_prefetch = 0 : i64, scratch_operands = 0 : i64, tpu.core_type = #tpu.core_type<tc>, window_params = [{transform_indices = @transform_0, window_bounds = array<i64: 1, 1, 8, 32>}, {transform_indices = @transform_1, window_bounds = array<i64: 1, 1, 8, 32>}, {transform_indices = @transform_2, window_bounds = array<i64: 1, 1, 8, 32>}, {transform_indices = @transform_3, window_bounds = array<i64: 1, 8, 8>}, {transform_indices = @transform_4, window_bounds = array<i64: 1, 1, 8, 32>}, {transform_indices = @transform_5, window_bounds = array<i64: 1, 1, 8, 8>}]} {
    %c0 = arith.constant 0 : index
    %c0_0 = arith.constant 0 : index
    %c0_1 = arith.constant 0 : index
    %c0_2 = arith.constant 0 : index
    %0 = vector.load %arg3[%c0, %c0_0, %c0_1, %c0_2] : memref<1x1x8x32xf32, #tpu.memory_space<vmem>>, vector<1x1x8x32xf32>
    %1 = vector.shape_cast %0 : vector<1x1x8x32xf32> to vector<8x32xf32>
    %c0_3 = arith.constant 0 : index
    %c0_4 = arith.constant 0 : index
    %c0_5 = arith.constant 0 : index
    %c0_6 = arith.constant 0 : index
    %2 = vector.load %arg4[%c0_3, %c0_4, %c0_5, %c0_6] : memref<1x1x8x32xf32, #tpu.memory_space<vmem>>, vector<1x1x8x32xf32>
    %3 = vector.shape_cast %2 : vector<1x1x8x32xf32> to vector<8x32xf32>
    %c0_7 = arith.constant 0 : index
    %c0_8 = arith.constant 0 : index
    %c0_9 = arith.constant 0 : index
    %c0_10 = arith.constant 0 : index
    %4 = vector.load %arg5[%c0_7, %c0_8, %c0_9, %c0_10] : memref<1x1x8x32xf32, #tpu.memory_space<vmem>>, vector<1x1x8x32xf32>
    %5 = vector.shape_cast %4 : vector<1x1x8x32xf32> to vector<8x32xf32>
    %cst = arith.constant 0.176776692 : f32
    %6 = vector.broadcast %cst : f32 to vector<8x32xf32>
    %7 = arith.mulf %1, %6 : vector<8x32xf32>
    %cst_11 = arith.constant dense<0.000000e+00> : vector<8x8xf32>
    %8 = tpu.matmul %7, %3, %cst_11 {dimension_numbers = #tpu.dot_dimension_numbers<[1], [1], [0], [0], [0, 0, 1, 0], [], []>} : vector<8x32xf32>, vector<8x32xf32>, vector<8x8xf32> -> vector<8x8xf32>
    %c0_12 = arith.constant 0 : index
    %c0_13 = arith.constant 0 : index
    %c0_14 = arith.constant 0 : index
    %9 = vector.load %arg6[%c0_12, %c0_13, %c0_14] : memref<1x8x8xi32, #tpu.memory_space<vmem>>, vector<1x8x8xi32>
    %10 = vector.shape_cast %9 : vector<1x8x8xi32> to vector<8x8xi32>
    %cst_15 = arith.constant dense<0> : vector<8x8xi32>
    %11 = arith.cmpi ne, %10, %cst_15 : vector<8x8xi32>
    %cst_16 = arith.constant 0xFF800000 : f32
    %12 = vector.broadcast %cst_16 : f32 to vector<8x8xf32>
    %13 = arith.select %11, %12, %8 : vector<8x8xi1>, vector<8x8xf32>
    %cst_17 = arith.constant dense<0xFF800000> : vector<8xf32>
    %14 = vector.multi_reduction <maximumf>, %13, %cst_17 [1] : vector<8x8xf32> to vector<8xf32>
    %15 = vector.shape_cast %14 : vector<8xf32> to vector<8x1xf32>
    %16 = vector.broadcast %15 : vector<8x1xf32> to vector<8x8xf32>
    %17 = arith.subf %13, %16 : vector<8x8xf32>
    %18 = math.exp %17 : vector<8x8xf32>
    %cst_18 = arith.constant dense<0.000000e+00> : vector<8xf32>
    %19 = vector.multi_reduction <add>, %18, %cst_18 [1] : vector<8x8xf32> to vector<8xf32>
    %20 = vector.shape_cast %19 : vector<8xf32> to vector<8x1xf32>
    %21 = tpu.reciprocal %20 {approx = true} : vector<8x1xf32> -> vector<8x1xf32>
    %22 = vector.broadcast %21 : vector<8x1xf32> to vector<8x8xf32>
    %23 = arith.mulf %18, %22 : vector<8x8xf32>
    %cst_19 = arith.constant dense<0.000000e+00> : vector<8x32xf32>
    %24 = tpu.matmul %23, %5, %cst_19 {dimension_numbers = #tpu.dot_dimension_numbers<[1], [0], [0], [1], [0, 0, 1, 1], [], []>} : vector<8x8xf32>, vector<8x32xf32>, vector<8x32xf32> -> vector<8x32xf32>
    %c0_20 = arith.constant 0 : index
    %c0_21 = arith.constant 0 : index
    %c0_22 = arith.constant 0 : index
    %c0_23 = arith.constant 0 : index
    %25 = vector.load %arg7[%c0_20, %c0_21, %c0_22, %c0_23] : memref<1x1x8x32xf32, #tpu.memory_space<vmem>>, vector<1x1x8x32xf32>
    %26 = vector.shape_cast %25 : vector<1x1x8x32xf32> to vector<8x32xf32>
    %27 = vector.shape_cast %24 : vector<8x32xf32> to vector<1x1x8x32xf32>
    tpu.vector_store %arg7[%c0_20, %c0_21, %c0_22, %c0_23], %27 {strides = array<i32>} : memref<1x1x8x32xf32, #tpu.memory_space<vmem>>, vector<1x1x8x32xf32>,
    %c0_24 = arith.constant 0 : index
    %c0_25 = arith.constant 0 : index
    %c0_26 = arith.constant 0 : index
    %c0_27 = arith.constant 0 : index
    %28 = vector.load %arg8[%c0_24, %c0_25, %c0_26, %c0_27] : memref<1x1x8x8xf32, #tpu.memory_space<vmem>>, vector<1x1x8x8xf32>
    %29 = vector.shape_cast %28 : vector<1x1x8x8xf32> to vector<8x8xf32>
    %30 = vector.shape_cast %23 : vector<8x8xf32> to vector<1x1x8x8xf32>
    tpu.vector_store %arg8[%c0_24, %c0_25, %c0_26, %c0_27], %30 {strides = array<i32>} : memref<1x1x8x8xf32, #tpu.memory_space<vmem>>, vector<1x1x8x8xf32>,
    return
  }
  func.func @transform_0(%arg0: i32, %arg1: i32, %arg2: i32) -> (i32, i32, i32, i32) {
    %c0_i32 = arith.constant 0 : i32
    %c0_i32_0 = arith.constant 0 : i32
    return %arg0, %arg1, %arg2, %c0_i32 : i32, i32, i32, i32
  }
  func.func @transform_1(%arg0: i32, %arg1: i32, %arg2: i32) -> (i32, i32, i32, i32) {
    %c0_i32 = arith.constant 0 : i32
    %c0_i32_0 = arith.constant 0 : i32
    %c0_i32_1 = arith.constant 0 : i32
    return %arg0, %arg1, %c0_i32, %c0_i32_0 : i32, i32, i32, i32
  }
  func.func @transform_2(%arg0: i32, %arg1: i32, %arg2: i32) -> (i32, i32, i32, i32) {
    %c0_i32 = arith.constant 0 : i32
    %c0_i32_0 = arith.constant 0 : i32
    %c0_i32_1 = arith.constant 0 : i32
    return %arg0, %arg1, %c0_i32, %c0_i32_0 : i32, i32, i32, i32
  }
  func.func @transform_3(%arg0: i32, %arg1: i32, %arg2: i32) -> (i32, i32, i32) {
    %c0_i32 = arith.constant 0 : i32
    %c0_i32_0 = arith.constant 0 : i32
    return %arg0, %arg2, %c0_i32 : i32, i32, i32
  }
  func.func @transform_4(%arg0: i32, %arg1: i32, %arg2: i32) -> (i32, i32, i32, i32) {
    %c0_i32 = arith.constant 0 : i32
    %c0_i32_0 = arith.constant 0 : i32
    return %arg0, %arg1, %arg2, %c0_i32 : i32, i32, i32, i32
  }
  func.func @transform_5(%arg0: i32, %arg1: i32, %arg2: i32) -> (i32, i32, i32, i32) {
    %c0_i32 = arith.constant 0 : i32
    %c0_i32_0 = arith.constant 0 : i32
    return %arg0, %arg1, %arg2, %c0_i32 : i32, i32, i32, i32
  }
}

</mosaic_0001>

<llo_original>
// kernel: tpu_custom_call.1
$region0: #{tpu_custom_call.1}
  #allocation0 [shape = 'u32[]', space=smem, size = 0x4, offset = 0x4, fixed_abs, tag = 'smem constant byte address 0x4 - core index']
  #allocation1 [shape = 'u32[144,128]{1,0:T(1,128)}', space=vmem, size = 0x12000, scoped, tag = 'internal scratch']
  %s0 = inlined_call_operand.hbm [shape: f32[2,4,8,32], index: 0, kind: input, shape index: {}]
  %s1 = inlined_call_operand.hbm [shape: f32[2,4,8,32], index: 1, kind: input, shape index: {}]
  %s2 = inlined_call_operand.hbm [shape: f32[2,4,8,32], index: 2, kind: input, shape index: {}]
  %s3 = inlined_call_operand.vmem [shape: s32[2,8,8], index: 3, kind: input, shape index: {}]
  %s4 = inlined_call_operand.hbm [shape: f32[2,4,8,32], index: 4, kind: output, shape index: {0}]
  %s5 = inlined_call_operand.hbm [shape: f32[2,4,8,8], index: 5, kind: output, shape index: {1}]
  %6 = xla_tuple %s4, %s5
  %s7 = sld [smem:[#allocation0]]
  $region69: #{tpu_custom_call.1} parent=0
    _
  %s9 = ssub.s32 1, %s7
  %s10 = scalar_select 0, %s9, %s7
  $region1: #{tpu_custom_call.1} parent=0
    #allocation2 [shape = 'u8[8192]{0}', space=vmem, size = 0x2000, scoped, tag = 'input window, operand 0']
    #allocation3 [shape = 's32[2]{0}', space=sflag, size = 0x8, scoped, tag = 'scoped memory for tpu_custom_call.1']
    #allocation4 [shape = 's32[2]{0}', space=sflag, size = 0x8, scoped, tag = 'scoped memory for tpu_custom_call.1']
    #allocation5 [shape = 'u8[8192]{0}', space=vmem, size = 0x2000, scoped, tag = 'input window, operand 1']
    #allocation6 [shape = 's32[2]{0}', space=sflag, size = 0x8, scoped, tag = 'scoped memory for tpu_custom_call.1']
    #allocation7 [shape = 'u8[8192]{0}', space=vmem, size = 0x2000, scoped, tag = 'input window, operand 2']
    #allocation8 [shape = 'u8[8192]{0}', space=vmem, size = 0x2000, scoped, tag = 'output window, operand 0']
    #allocation9 [shape = 'u8[8192]{0}', space=vmem, size = 0x2000, scoped, tag = 'output window, operand 1']
    #allocation10 [shape = 's32[2]{0}', space=sflag, size = 0x8, scoped, tag = 'scoped memory for tpu_custom_call.1']
    %11 = vsyncpa [#allocation3], 0
    %s12 = scalar_lea.sflag [#allocation3], 1
    %13 = vsyncpa %s12, 0
    %14 = vsyncpa [#allocation6], 0
    %s15 = scalar_lea.sflag [#allocation6], 1
    %16 = vsyncpa %s15, 0
    %17 = vsyncpa [#allocation4], 0
    %s18 = scalar_lea.sflag [#allocation4], 1
    %19 = vsyncpa %s18, 0
    %20 = vsyncpa [#allocation10], 0
    %s21 = scalar_lea.sflag [#allocation10], 1
    %22 = vsyncpa %s21, 0
    loop: start=0, step=1, limit=10
    $region2: #{tpu_custom_call.1} parent=1 // loop_pre_header
      _
    $region3: #{tpu_custom_call.1} parent=1 // loop_header
      %s24 = sphi 0, %s28
      %p25 = scmp.ge.s32.totalorder %s24, 10
      %s31 = sphi 0, %s50
      %s32 = sphi 0, %s46
      %s33 = sphi 0, %s42
      %s34 = sphi 0, %s31
      %s35 = sphi 0, %s32
      %s36 = sphi 0, %s33
      %s37 = sphi 0, %s34
      %s38 = sphi 0, %s35
      %s39 = sphi 0, %s36
      %s57 = sphi 0, %s59
      %s60 = sphi 0, %s57
      %s61 = sphi 0, %s60
      %s77 = sphi 0, %s61
      %s85 = sphi 0, %s87
      %s88 = sphi 0, %s85
      %s89 = sphi 0, %s88
      %s105 = sphi 0, %s89
      %s113 = sphi 0, %s115
      %s116 = sphi 0, %s113
      %s117 = sphi 0, %s116
      %s133 = sphi 0, %s117
      %s141 = sphi 0, %s143
      %s144 = sphi 0, %s141
      %s145 = sphi 0, %s144
      %s161 = sphi 0, %s145
      %s171 = sphi 0, %s173
      %s174 = sphi 0, %s171
      %s175 = sphi 0, %s174
      %s191 = sphi 0, %s175
      %s201 = sphi 0, %s203
      %s204 = sphi 0, %s201
      %s205 = sphi 0, %s204
      %s221 = sphi 0, %s205
    $region4: #{tpu_custom_call.1} parent=1 // loop_header_branch
      %27 = sbr.rel (%p25) target = $region8
    $region5: #{tpu_custom_call.1} parent=1 // loop_body
      %s29 = ssub.s32 %s24, 1
      %s30 = ssub.s32 %s24, 2
      %s40 = sadd.s32 1, %s33
      %p41 = scmp.ge.s32.totalorder %s40, 1
      %s42 = scalar_select %p41, 0, %s40
      %s43 = sadd.s32 1, %s32
      %s44 = scalar_select %p41, %s43, %s32
      %p45 = scmp.ge.s32.totalorder %s44, 4
      %s46 = scalar_select %p45, 0, %s44
      %s47 = sadd.s32 1, %s31
      %s48 = scalar_select %p45, %s47, %s31
      %p49 = scmp.ge.s32.totalorder %s48, 2
      %s50 = scalar_select %p49, 0, %s48
      %s51 = ssub.s32 %s31, %s50
      %s52 = ssub.s32 %s32, %s46
      %s53 = sor.u32 %s51, %s52
      %s54 = ssub.s32 %s33, %s42
      %s55 = sor.u32 %s53, %s54
      %p56 = scmp.eq.s32.totalorder %s55, 0
      %s58 = sadd.s32 %s57, 1
      %s59 = scalar_select %p56, %s57, %s58
      %p62 = pneg %p56
      %p63 = scmp.eq.s32.totalorder %s24, 7
      %p64 = por %p62, %p63
      %p65 = scmp.ne.s32.totalorder %s57, %s60
      %p66 = scmp.eq.s32.totalorder %s24, 0
      %p67 = por %p65, %p66
      %p68 = scmp.ne.s32.totalorder %s57, %s60
      %p69 = scmp.eq.s32.totalorder %s29, 7
      %p70 = por %p68, %p69
      %p71 = scmp.ne.s32.totalorder %s60, %s61
      %p72 = scmp.eq.s32.totalorder %s29, 0
      %p73 = por %p71, %p72
      %p74 = scmp.ne.s32.totalorder %s60, %s61
      %p75 = scmp.eq.s32.totalorder %s30, 7
      %p76 = por %p74, %p75
      %p78 = scmp.ne.s32.totalorder %s61, %s77
      %p79 = scmp.eq.s32.totalorder %s30, 0
      %p80 = por %p78, %p79
      %s81 = ssub.s32 %s31, %s50
      %s82 = ssub.s32 %s32, %s46
      %s83 = sor.u32 %s81, %s82
      %p84 = scmp.eq.s32.totalorder %s83, 0
      %s86 = sadd.s32 %s85, 1
      %s87 = scalar_select %p84, %s85, %s86
      %p90 = pneg %p84
      %p91 = scmp.eq.s32.totalorder %s24, 7
      %p92 = por %p90, %p91
      %p93 = scmp.ne.s32.totalorder %s85, %s88
      %p94 = scmp.eq.s32.totalorder %s24, 0
      %p95 = por %p93, %p94
      %p96 = scmp.ne.s32.totalorder %s85, %s88
      %p97 = scmp.eq.s32.totalorder %s29, 7
      %p98 = por %p96, %p97
      %p99 = scmp.ne.s32.totalorder %s88, %s89
      %p100 = scmp.eq.s32.totalorder %s29, 0
      %p101 = por %p99, %p100
      %p102 = scmp.ne.s32.totalorder %s88, %s89
      %p103 = scmp.eq.s32.totalorder %s30, 7
      %p104 = por %p102, %p103
      %p106 = scmp.ne.s32.totalorder %s89, %s105
      %p107 = scmp.eq.s32.totalorder %s30, 0
      %p108 = por %p106, %p107
      %s109 = ssub.s32 %s31, %s50
      %s110 = ssub.s32 %s32, %s46
      %s111 = sor.u32 %s109, %s110
      %p112 = scmp.eq.s32.totalorder %s111, 0
      %s114 = sadd.s32 %s113, 1
      %s115 = scalar_select %p112, %s113, %s114
      %p118 = pneg %p112
      %p119 = scmp.eq.s32.totalorder %s24, 7
      %p120 = por %p118, %p119
      %p121 = scmp.ne.s32.totalorder %s113, %s116
      %p122 = scmp.eq.s32.totalorder %s24, 0
      %p123 = por %p121, %p122
      %p124 = scmp.ne.s32.totalorder %s113, %s116
      %p125 = scmp.eq.s32.totalorder %s29, 7
      %p126 = por %p124, %p125
      %p127 = scmp.ne.s32.totalorder %s116, %s117
      %p128 = scmp.eq.s32.totalorder %s29, 0
      %p129 = por %p127, %p128
      %p130 = scmp.ne.s32.totalorder %s116, %s117
      %p131 = scmp.eq.s32.totalorder %s30, 7
      %p132 = por %p130, %p131
      %p134 = scmp.ne.s32.totalorder %s117, %s133
      %p135 = scmp.eq.s32.totalorder %s30, 0
      %p136 = por %p134, %p135
      %s137 = ssub.s32 %s31, %s50
      %s138 = ssub.s32 %s33, %s42
      %s139 = sor.u32 %s137, %s138
      %p140 = scmp.eq.s32.totalorder %s139, 0
      %s142 = sadd.s32 %s141, 1
      %s143 = scalar_select %p140, %s141, %s142
      %p146 = pneg %p140
      %p147 = scmp.eq.s32.totalorder %s24, 7
      %p148 = por %p146, %p147
      %p149 = scmp.ne.s32.totalorder %s141, %s144
      %p150 = scmp.eq.s32.totalorder %s24, 0
      %p151 = por %p149, %p150
      %p152 = scmp.ne.s32.totalorder %s141, %s144
      %p153 = scmp.eq.s32.totalorder %s29, 7
      %p154 = por %p152, %p153
      %p155 = scmp.ne.s32.totalorder %s144, %s145
      %p156 = scmp.eq.s32.totalorder %s29, 0
      %p157 = por %p155, %p156
      %p158 = scmp.ne.s32.totalorder %s144, %s145
      %p159 = scmp.eq.s32.totalorder %s30, 7
      %p160 = por %p158, %p159
      %p162 = scmp.ne.s32.totalorder %s145, %s161
      %p163 = scmp.eq.s32.totalorder %s30, 0
      %p164 = por %p162, %p163
      %s165 = ssub.s32 %s31, %s50
      %s166 = ssub.s32 %s32, %s46
      %s167 = sor.u32 %s165, %s166
      %s168 = ssub.s32 %s33, %s42
      %s169 = sor.u32 %s167, %s168
      %p170 = scmp.eq.s32.totalorder %s169, 0
      %s172 = sadd.s32 %s171, 1
      %s173 = scalar_select %p170, %s171, %s172
      %p176 = pneg %p170
      %p177 = scmp.eq.s32.totalorder %s24, 7
      %p178 = por %p176, %p177
      %p179 = scmp.ne.s32.totalorder %s171, %s174
      %p180 = scmp.eq.s32.totalorder %s24, 0
      %p181 = por %p179, %p180
      %p182 = scmp.ne.s32.totalorder %s171, %s174
      %p183 = scmp.eq.s32.totalorder %s29, 7
      %p184 = por %p182, %p183
      %p185 = scmp.ne.s32.totalorder %s174, %s175
      %p186 = scmp.eq.s32.totalorder %s29, 0
      %p187 = por %p185, %p186
      %p188 = scmp.ne.s32.totalorder %s174, %s175
      %p189 = scmp.eq.s32.totalorder %s30, 7
      %p190 = por %p188, %p189
      %p192 = scmp.ne.s32.totalorder %s175, %s191
      %p193 = scmp.eq.s32.totalorder %s30, 0
      %p194 = por %p192, %p193
      %s195 = ssub.s32 %s31, %s50
      %s196 = ssub.s32 %s32, %s46
      %s197 = sor.u32 %s195, %s196
      %s198 = ssub.s32 %s33, %s42
      %s199 = sor.u32 %s197, %s198
      %p200 = scmp.eq.s32.totalorder %s199, 0
      %s202 = sadd.s32 %s201, 1
      %s203 = scalar_select %p200, %s201, %s202
      %p206 = pneg %p200
      %p207 = scmp.eq.s32.totalorder %s24, 7
      %p208 = por %p206, %p207
      %p209 = scmp.ne.s32.totalorder %s201, %s204
      %p210 = scmp.eq.s32.totalorder %s24, 0
      %p211 = por %p209, %p210
      %p212 = scmp.ne.s32.totalorder %s201, %s204
      %p213 = scmp.eq.s32.totalorder %s29, 7
      %p214 = por %p212, %p213
      %p215 = scmp.ne.s32.totalorder %s204, %s205
      %p216 = scmp.eq.s32.totalorder %s29, 0
      %p217 = por %p215, %p216
      %p218 = scmp.ne.s32.totalorder %s204, %s205
      %p219 = scmp.eq.s32.totalorder %s30, 7
      %p220 = por %p218, %p219
      %p222 = scmp.ne.s32.totalorder %s205, %s221
      %p223 = scmp.eq.s32.totalorder %s30, 0
      %p224 = por %p222, %p223
      %p225 = scmp.le.s32.totalorder 1, %s24
      %p226 = scmp.lt.s32.totalorder %s24, 9
      %p227 = pnand %p225, %p226
      %p228 = pneg %p227
      // Predicated region
      $region9: #{tpu_custom_call.1} parent=5 // pred_check
        _
      $region10: #{tpu_custom_call.1} parent=5 // pred_check_branch
        %230 = sbr.rel (%p227) target = $region12
      $region11: #{tpu_custom_call.1} parent=5 // pred_region
        %s231 = ssub.s32 %s24, 1
      $region12: #{tpu_custom_call.1} parent=5 // pred_fallthru
        _
      %p232 = scmp.lt.s32.totalorder %s24, 8
      // Predicated region
      $region13: #{tpu_custom_call.1} parent=5 // pred_check
        %p233 = pneg %p232
      $region14: #{tpu_custom_call.1} parent=5 // pred_check_branch
        %235 = sbr.rel (%p233) target = $region16
      $region15: #{tpu_custom_call.1} parent=5 // pred_region
        // Predicated region
        $region17: #{tpu_custom_call.1} parent=15 // pred_check
          %p236 = pneg %p67
        $region18: #{tpu_custom_call.1} parent=15 // pred_check_branch
          %238 = sbr.rel (%p236) target = $region20
        $region19: #{tpu_custom_call.1} parent=15 // pred_region
          %s239 = sand.u32 %s57, 1
          %s240 = scalar_lea.sflag [#allocation3], %s239
          %s241 = sand.u32 %s57, 1
          %s242 = smul.addr %s241, 8
          %s243 = scalar_lea.vmem [#allocation2], %s242
          %s245 = ssub.s32 128, 128
          %246 = vsyncadd %s240, %s245
          %s247 = sadd.s32 %s33, %s32
          %s248 = smul.addr %s31, 4
          %s249 = sadd.s32 %s247, %s248
          %s250 = smul.addr %s249, 128
          %s251 = scalar_lea.hbm %s0, %s250
          %s253 = sshll.u32 %s243, 4
          %s254 = int_to_ptr.vmem [resolvable:$true] %s253
          %256 = dma.hbm_to_vmem [thread:$0]  %s251, 128, %s254, %s240
        $region20: #{tpu_custom_call.1} parent=15 // pred_fallthru
          _
        // Predicated region
        $region21: #{tpu_custom_call.1} parent=15 // pred_check
          %p257 = pneg %p95
        $region22: #{tpu_custom_call.1} parent=15 // pred_check_branch
          %259 = sbr.rel (%p257) target = $region24
        $region23: #{tpu_custom_call.1} parent=15 // pred_region
          %s260 = sand.u32 %s24, 1
          %s261 = scalar_lea.sflag [#allocation6], %s260
          %s262 = sand.u32 %s85, 1
          %s263 = smul.addr %s262, 8
          %s264 = scalar_lea.vmem [#allocation5], %s263
          %s266 = ssub.s32 128, 128
          %267 = vsyncadd %s261, %s266
          %s268 = smul.addr %s31, 4
          %s269 = sadd.s32 %s32, %s268
          %s270 = smul.addr %s269, 128
          %s271 = scalar_lea.hbm %s1, %s270
          %s273 = sshll.u32 %s264, 4
          %s274 = int_to_ptr.vmem [resolvable:$true] %s273
          %276 = dma.hbm_to_vmem [thread:$0]  %s271, 128, %s274, %s261
        $region24: #{tpu_custom_call.1} parent=15 // pred_fallthru
          _
        // Predicated region
        $region25: #{tpu_custom_call.1} parent=15 // pred_check
          %p277 = pneg %p123
        $region26: #{tpu_custom_call.1} parent=15 // pred_check_branch
          %279 = sbr.rel (%p277) target = $region28
        $region27: #{tpu_custom_call.1} parent=15 // pred_region
          %s280 = sand.u32 %s24, 1
          %s281 = scalar_lea.sflag [#allocation6], %s280
          %s282 = sand.u32 %s113, 1
          %s283 = smul.addr %s282, 8
          %s284 = scalar_lea.vmem [#allocation7], %s283
          %s286 = ssub.s32 128, 128
          %287 = vsyncadd %s281, %s286
          %s288 = smul.addr %s31, 4
          %s289 = sadd.s32 %s32, %s288
          %s290 = smul.addr %s289, 128
          %s291 = scalar_lea.hbm %s2, %s290
          %s293 = sshll.u32 %s284, 4
          %s294 = int_to_ptr.vmem [resolvable:$true] %s293
          %296 = dma.hbm_to_vmem [thread:$0]  %s291, 128, %s294, %s281
        $region28: #{tpu_custom_call.1} parent=15 // pred_fallthru
          _
        // Predicated region
        $region29: #{tpu_custom_call.1} parent=15 // pred_check
          %p297 = pneg %p151
        $region30: #{tpu_custom_call.1} parent=15 // pred_check_branch
          %299 = sbr.rel (%p297) target = $region32
        $region31: #{tpu_custom_call.1} parent=15 // pred_region
          %p300 = scmp.lt.s32.totalorder %s31, 1
          %s301 = scalar_select %p300, %s31, 1
          %p302 = scmp.lt.s32.totalorder %s33, 0
          %s303 = scalar_select %p302, %s33, 0
          %s304 = sadd.s32 %s303, %s301
          %s305 = smul.addr %s304, 8
          %s306 = scalar_lea.vmem %s3, %s305
        $region32: #{tpu_custom_call.1} parent=15 // pred_fallthru
          _
      $region16: #{tpu_custom_call.1} parent=5 // pred_fallthru
        _
      %p307 = scmp.le.s32.totalorder 1, %s24
      %p308 = scmp.lt.s32.totalorder %s24, 9
      %p309 = pnand %p307, %p308
      %p310 = pneg %p309
      // Predicated region
      $region33: #{tpu_custom_call.1} parent=5 // pred_check
        _
      $region34: #{tpu_custom_call.1} parent=5 // pred_check_branch
        %312 = sbr.rel (%p309) target = $region36
      $region35: #{tpu_custom_call.1} parent=5 // pred_region
        %s313 = ssub.s32 %s24, 1
        %s314 = sand.u32 %s60, 1
        %s315 = scalar_lea.sflag [#allocation3], %s314
        %s316 = sand.u32 %s60, 1
        %s317 = smul.addr %s316, 8
        %s318 = scalar_lea.vmem [#allocation2], %s317
        // Predicated region
        $region37: #{tpu_custom_call.1} parent=35 // pred_check
          %p319 = pneg %p73
        $region38: #{tpu_custom_call.1} parent=35 // pred_check_branch
          %321 = sbr.rel (%p319) target = $region40
        $region39: #{tpu_custom_call.1} parent=35 // pred_region
          %322 = dma.done %s315, 128
        $region40: #{tpu_custom_call.1} parent=35 // pred_fallthru
          _
        %s323 = sand.u32 %s29, 1
        %s324 = scalar_lea.sflag [#allocation6], %s323
        %s325 = sand.u32 %s88, 1
        %s326 = smul.addr %s325, 8
        %s327 = scalar_lea.vmem [#allocation5], %s326
        // Predicated region
        $region41: #{tpu_custom_call.1} parent=35 // pred_check
          %p328 = pneg %p101
        $region42: #{tpu_custom_call.1} parent=35 // pred_check_branch
          %330 = sbr.rel (%p328) target = $region44
        $region43: #{tpu_custom_call.1} parent=35 // pred_region
          %331 = dma.done %s324, 128
        $region44: #{tpu_custom_call.1} parent=35 // pred_fallthru
          _
        %s332 = sand.u32 %s29, 1
        %s333 = scalar_lea.sflag [#allocation6], %s332
        %s334 = sand.u32 %s116, 1
        %s335 = smul.addr %s334, 8
        %s336 = scalar_lea.vmem [#allocation7], %s335
        // Predicated region
        $region45: #{tpu_custom_call.1} parent=35 // pred_check
          %p337 = pneg %p129
        $region46: #{tpu_custom_call.1} parent=35 // pred_check_branch
          %339 = sbr.rel (%p337) target = $region48
        $region47: #{tpu_custom_call.1} parent=35 // pred_region
          %340 = dma.done %s333, 128
        $region48: #{tpu_custom_call.1} parent=35 // pred_fallthru
          _
        %s341 = sand.u32 %s60, 1
        %s342 = scalar_lea.sflag [#allocation3], %s341
        %s343 = sand.u32 %s60, 1
        %s344 = smul.addr %s343, 8
        %s345 = scalar_lea.vmem [#allocation2], %s344
        %p346 = pneg %p73
        %p347 = pneg %p70
        %s348 = sand.u32 %s29, 1
        %s349 = scalar_lea.sflag [#allocation6], %s348
        %s350 = sand.u32 %s88, 1
        %s351 = smul.addr %s350, 8
        %s352 = scalar_lea.vmem [#allocation5], %s351
        %p353 = pneg %p101
        %p354 = pneg %p98
        %s355 = sand.u32 %s29, 1
        %s356 = scalar_lea.sflag [#allocation6], %s355
        %s357 = sand.u32 %s116, 1
        %s358 = smul.addr %s357, 8
        %s359 = scalar_lea.vmem [#allocation7], %s358
        %p360 = pneg %p129
        %p361 = pneg %p126
        %p362 = scmp.lt.s32.totalorder %s34, 1
        %s363 = scalar_select %p362, %s34, 1
        %p364 = scmp.lt.s32.totalorder %s36, 0
        %s365 = scalar_select %p364, %s36, 0
        %s366 = sadd.s32 %s365, %s363
        %s367 = smul.addr %s366, 8
        %s368 = scalar_lea.vmem %s3, %s367
        %p369 = pneg %p157
        %p370 = pneg %p154
        %p371 = pneg %p187
        %p372 = pneg %p184
        %s373 = sand.u32 %s174, 1
        %s374 = scalar_lea.sflag [#allocation4], %s373
        %s375 = sand.u32 %s174, 1
        %s376 = smul.addr %s375, 8
        %s377 = scalar_lea.vmem [#allocation8], %s376
        %p378 = pneg %p217
        %p379 = pneg %p214
        %s380 = sand.u32 %s204, 1
        %s381 = scalar_lea.sflag [#allocation10], %s380
        %s382 = sand.u32 %s204, 1
        %s383 = smul.addr %s382, 8
        %s384 = scalar_lea.vmem [#allocation9], %s383
        %p385 = scmp.lt.s32.totalorder %s34, 1
        %s386 = scalar_select %p385, %s34, 1
        %p387 = scmp.lt.s32.totalorder %s36, 0
        %s388 = scalar_select %p387, %s36, 0
        %s389 = sadd.s32 %s388, %s386
        %s390 = smul.addr %s389, 8
        %s391 = scalar_lea.vmem %s3, %s390
        %v392 = vld [vmem:[%s318] sm:$0xff]
        %v393 = vld [vmem:[%s327] sm:$0xff]
        %v394 = vld [vmem:[%s336] sm:$0xff]
        %v395 = vmul.f32 %v392, 0.17677669
        %vm396 = vcmask 261120
        %v398 = vsel %vm396, %v395, 0
        %v401 = vsel %vm396, %v393, 0
        %403 = vmatprep.subr.mxu0 0.0
        %404 = vmatpush1.xpose.msra.mxu0 0.0
        %405 = vmatprep.subr.mxu0 0.0
        %406 = vmatpush1.xpose.msra.mxu0 0.0
        %407 = vmatprep.subr.mxu0 0.0
        %408 = vmatpush1.xpose.msra.mxu0 0.0
        %409 = vmatprep.subr.mxu0 0.0
        %410 = vmatpush1.xpose.msra.mxu0 0.0
        %411 = vmatprep.subr.mxu0 0.0
        %412 = vmatpush1.xpose.msra.mxu0 0.0
        %413 = vmatprep.subr.mxu0 0.0
        %414 = vmatpush1.xpose.msra.mxu0 0.0
        %415 = vmatprep.subr.mxu0 0.0
        %416 = vmatpush1.xpose.msra.mxu0 0.0
        %417 = vmatprep.subr.mxu0 0.0
        %418 = vmatpush1.xpose.msra.mxu0 0.0
        %419 = vmatprep.subr.mxu0 0.0
        %420 = vmatpush1.xpose.msra.mxu0 0.0
        %421 = vmatprep.subr.mxu0 0.0
        %422 = vmatpush1.xpose.msra.mxu0 0.0
        %423 = vmatprep.subr.mxu0 0.0
        %424 = vmatpush1.xpose.msra.mxu0 0.0
        %425 = vmatprep.subr.mxu0 0.0
        %426 = vmatpush1.xpose.msra.mxu0 0.0
        %427 = vmatprep.subr.mxu0 0.0
        %428 = vmatpush1.xpose.msra.mxu0 0.0
        %429 = vmatprep.subr.mxu0 0.0
        %430 = vmatpush1.xpose.msra.mxu0 0.0
        %431 = vmatprep.subr.mxu0 0.0
        %432 = vmatpush1.xpose.msra.mxu0 0.0
        %433 = vmatprep.subr.mxu0 0.0
        %434 = vmatpush1.xpose.msra.mxu0 %v401
        %435 = vmatprep.subr.mxu0 0.0
        %436 = vmatpush2.xpose.msra.mxu0 0.0
        %437 = vmatprep.subr.mxu0 0.0
        %438 = vmatpush2.xpose.msra.mxu0 0.0
        %439 = vmatprep.subr.mxu0 0.0
        %440 = vmatpush2.xpose.msra.mxu0 0.0
        %441 = vmatprep.subr.mxu0 0.0
        %442 = vmatpush2.xpose.msra.mxu0 0.0
        %443 = vmatprep.subr.mxu0 0.0
        %444 = vmatpush2.xpose.msra.mxu0 0.0
        %445 = vmatprep.subr.mxu0 0.0
        %446 = vmatpush2.xpose.msra.mxu0 0.0
        %447 = vmatprep.subr.mxu0 0.0
        %448 = vmatpush2.xpose.msra.mxu0 0.0
        %449 = vmatprep.subr.mxu0 0.0
        %450 = vmatpush2.xpose.msra.mxu0 0.0
        %451 = vmatprep.subr.mxu0 0.0
        %452 = vmatpush2.xpose.msra.mxu0 0.0
        %453 = vmatprep.subr.mxu0 0.0
        %454 = vmatpush2.xpose.msra.mxu0 0.0
        %455 = vmatprep.subr.mxu0 0.0
        %456 = vmatpush2.xpose.msra.mxu0 0.0
        %457 = vmatprep.subr.mxu0 0.0
        %458 = vmatpush2.xpose.msra.mxu0 0.0
        %459 = vmatprep.subr.mxu0 0.0
        %460 = vmatpush2.xpose.msra.mxu0 0.0
        %461 = vmatprep.subr.mxu0 0.0
        %462 = vmatpush2.xpose.msra.mxu0 0.0
        %463 = vmatprep.subr.mxu0 0.0
        %464 = vmatpush2.xpose.msra.mxu0 0.0
        %465 = vmatprep.subr.mxu0 0.0
        %466 = vmatpush2.xpose.msra.mxu0 0.0
        %467 = vmatprep.mubr.f32.mxu0 0.0
        %468 = vmatmul.mubr.f32.gmra.mxu0 %v398
        %v469 = vpop.f32.mrf.mxu0
        %v470 = vadd.f32 0.0, %v469
        %v471 = vpop.f32.mrf.mxu0
        %472 = vdwg.mxu0
        %v473 = vld [vmem:[%s391] sm:$0xff]
        %vm474 = vcmp.ne.s32.totalorder %v473, 0
        %v475 = vsel %vm474, -inf, %v470
        %vm476 = vcmask 64512
        %v477 = vsel %vm476, %v475, -inf
        %478 = vmax.xlane.f32.xlu0 %v477
        %v479 = vpop.xlane.xlu0 %478
        %v480 = vsub.f32 %v475, %v479
        %v481 = vmul.f32 %v480, 1.442695
        %v482 = vpow.pop %v481
        %v483 = vsel %vm476, %v482, 0.0
        %484 = vadd.xlane.f32.xlu0 %v483
        %v485 = vpop.xlane.xlu0 %484
        %v486 = vrcp.pop %v485
        %v487 = vmul.f32 %v482, %v486
        %v489 = vsel %vm476, %v487, 0
        %491 = vmatprep.subr.mxu0 0.0
        %492 = vmatpush1.msra.mxu0 0.0
        %493 = vmatprep.subr.mxu0 0.0
        %494 = vmatpush1.msra.mxu0 0.0
        %495 = vmatprep.subr.mxu0 0.0
        %496 = vmatpush1.msra.mxu0 0.0
        %497 = vmatprep.subr.mxu0 0.0
        %498 = vmatpush1.msra.mxu0 0.0
        %499 = vmatprep.subr.mxu0 0.0
        %500 = vmatpush1.msra.mxu0 0.0
        %501 = vmatprep.subr.mxu0 0.0
        %502 = vmatpush1.msra.mxu0 0.0
        %503 = vmatprep.subr.mxu0 0.0
        %504 = vmatpush1.msra.mxu0 0.0
        %505 = vmatprep.subr.mxu0 0.0
        %506 = vmatpush1.msra.mxu0 0.0
        %507 = vmatprep.subr.mxu0 0.0
        %508 = vmatpush1.msra.mxu0 0.0
        %509 = vmatprep.subr.mxu0 0.0
        %510 = vmatpush1.msra.mxu0 0.0
        %511 = vmatprep.subr.mxu0 0.0
        %512 = vmatpush1.msra.mxu0 0.0
        %513 = vmatprep.subr.mxu0 0.0
        %514 = vmatpush1.msra.mxu0 0.0
        %515 = vmatprep.subr.mxu0 0.0
        %516 = vmatpush1.msra.mxu0 0.0
        %517 = vmatprep.subr.mxu0 0.0
        %518 = vmatpush1.msra.mxu0 0.0
        %519 = vmatprep.subr.mxu0 0.0
        %520 = vmatpush1.msra.mxu0 0.0
        %521 = vmatprep.subr.mxu0 0.0
        %522 = vmatpush1.msra.mxu0 %v394
        %523 = vmatprep.subr.mxu0 0.0
        %524 = vmatpush2.msra.mxu0 0.0
        %525 = vmatprep.subr.mxu0 0.0
        %526 = vmatpush2.msra.mxu0 0.0
        %527 = vmatprep.subr.mxu0 0.0
        %528 = vmatpush2.msra.mxu0 0.0
        %529 = vmatprep.subr.mxu0 0.0
        %530 = vmatpush2.msra.mxu0 0.0
        %531 = vmatprep.subr.mxu0 0.0
        %532 = vmatpush2.msra.mxu0 0.0
        %533 = vmatprep.subr.mxu0 0.0
        %534 = vmatpush2.msra.mxu0 0.0
        %535 = vmatprep.subr.mxu0 0.0
        %536 = vmatpush2.msra.mxu0 0.0
        %537 = vmatprep.subr.mxu0 0.0
        %538 = vmatpush2.msra.mxu0 0.0
        %539 = vmatprep.subr.mxu0 0.0
        %540 = vmatpush2.msra.mxu0 0.0
        %541 = vmatprep.subr.mxu0 0.0
        %542 = vmatpush2.msra.mxu0 0.0
        %543 = vmatprep.subr.mxu0 0.0
        %544 = vmatpush2.msra.mxu0 0.0
        %545 = vmatprep.subr.mxu0 0.0
        %546 = vmatpush2.msra.mxu0 0.0
        %547 = vmatprep.subr.mxu0 0.0
        %548 = vmatpush2.msra.mxu0 0.0
        %549 = vmatprep.subr.mxu0 0.0
        %550 = vmatpush2.msra.mxu0 0.0
        %551 = vmatprep.subr.mxu0 0.0
        %552 = vmatpush2.msra.mxu0 0.0
        %553 = vmatprep.subr.mxu0 0.0
        %554 = vmatpush2.msra.mxu0 0.0
        %555 = vmatprep.mubr.f32.mxu0 0.0
        %556 = vmatmul.mubr.f32.gmra.mxu0 %v489
        %v557 = vpop.f32.mrf.mxu0
        %v558 = vadd.f32 0.0, %v557
        %v559 = vpop.f32.mrf.mxu0
        %560 = vdwg.mxu0
        %561 = vst.msk [vmem:[%s377] sm:$0xff] %vm396, %v558
        %562 = vst.msk [vmem:[%s384] sm:$0xff] %vm476, %v487
        %s563 = sand.u32 %s174, 1
        %s564 = scalar_lea.sflag [#allocation4], %s563
        %s565 = sand.u32 %s174, 1
        %s566 = smul.addr %s565, 8
        %s567 = scalar_lea.vmem [#allocation8], %s566
        %s568 = sand.u32 %s204, 1
        %s569 = scalar_lea.sflag [#allocation10], %s568
        %s570 = sand.u32 %s204, 1
        %s571 = smul.addr %s570, 8
        %s572 = scalar_lea.vmem [#allocation9], %s571
        // Predicated region
        $region49: #{tpu_custom_call.1} parent=35 // pred_check
          %p573 = pneg %p184
        $region50: #{tpu_custom_call.1} parent=35 // pred_check_branch
          %575 = sbr.rel (%p573) target = $region52
        $region51: #{tpu_custom_call.1} parent=35 // pred_region
          %s577 = ssub.s32 128, 128
          %578 = vsyncadd %s564, %s577
          %s579 = sadd.s32 %s36, %s35
          %s580 = smul.addr %s34, 4
          %s581 = sadd.s32 %s579, %s580
          %s582 = smul.addr %s581, 128
          %s583 = scalar_lea.hbm %s4, %s582
          %s585 = sshll.u32 %s567, 4
          %s586 = int_to_ptr.vmem [resolvable:$true] %s585
          %588 = dma.vmem_to_hbm [thread:$0]  %s586, 128, %s583, %s564
        $region52: #{tpu_custom_call.1} parent=35 // pred_fallthru
          _
        // Predicated region
        $region53: #{tpu_custom_call.1} parent=35 // pred_check
          %p589 = pneg %p214
        $region54: #{tpu_custom_call.1} parent=35 // pred_check_branch
          %591 = sbr.rel (%p589) target = $region56
        $region55: #{tpu_custom_call.1} parent=35 // pred_region
          %s593 = ssub.s32 128, 128
          %594 = vsyncadd %s569, %s593
          %s595 = sadd.s32 %s36, %s35
          %s596 = smul.addr %s34, 4
          %s597 = sadd.s32 %s595, %s596
          %s598 = smul.addr %s597, 128
          %s599 = scalar_lea.hbm %s5, %s598
          %s601 = sshll.u32 %s572, 4
          %s602 = int_to_ptr.vmem [resolvable:$true] %s601
          %604 = dma.vmem_to_hbm [thread:$0]  %s602, 128, %s599, %s569
        $region56: #{tpu_custom_call.1} parent=35 // pred_fallthru
          _
      $region36: #{tpu_custom_call.1} parent=5 // pred_fallthru
        _
      %p605 = scmp.le.s32.totalorder 2, %s24
      // Predicated region
      $region57: #{tpu_custom_call.1} parent=5 // pred_check
        %p606 = pneg %p605
      $region58: #{tpu_custom_call.1} parent=5 // pred_check_branch
        %608 = sbr.rel (%p606) target = $region60
      $region59: #{tpu_custom_call.1} parent=5 // pred_region
        %s609 = ssub.s32 %s24, 2
        // Predicated region
        $region61: #{tpu_custom_call.1} parent=59 // pred_check
          %p610 = pneg %p190
        $region62: #{tpu_custom_call.1} parent=59 // pred_check_branch
          %612 = sbr.rel (%p610) target = $region64
        $region63: #{tpu_custom_call.1} parent=59 // pred_region
          %s613 = sand.u32 %s175, 1
          %s614 = scalar_lea.sflag [#allocation4], %s613
          %s615 = sand.u32 %s175, 1
          %s616 = smul.addr %s615, 8
          %s617 = scalar_lea.vmem [#allocation8], %s616
          %618 = dma.done %s614, 128
        $region64: #{tpu_custom_call.1} parent=59 // pred_fallthru
          _
        // Predicated region
        $region65: #{tpu_custom_call.1} parent=59 // pred_check
          %p619 = pneg %p220
        $region66: #{tpu_custom_call.1} parent=59 // pred_check_branch
          %621 = sbr.rel (%p619) target = $region68
        $region67: #{tpu_custom_call.1} parent=59 // pred_region
          %s622 = sand.u32 %s205, 1
          %s623 = scalar_lea.sflag [#allocation10], %s622
          %s624 = sand.u32 %s205, 1
          %s625 = smul.addr %s624, 8
          %s626 = scalar_lea.vmem [#allocation9], %s625
          %627 = dma.done %s623, 128
        $region68: #{tpu_custom_call.1} parent=59 // pred_fallthru
          _
      $region60: #{tpu_custom_call.1} parent=5 // pred_fallthru
        _
    $region6: #{tpu_custom_call.1} parent=1 // loop_footer
      %s28 = sadd.s32 1, %s24
    $region7: #{tpu_custom_call.1} parent=1 // loop_footer_branch
      %23 = sbr.rel target = $region3
    $region8: #{tpu_custom_call.1} parent=1 // loop_exit
      _
    %628 = vsyncpa [#allocation3], 1
    %s629 = scalar_lea.sflag [#allocation3], 1
    %630 = vsyncpa %s629, 1
    %631 = vsyncpa [#allocation6], 1
    %s632 = scalar_lea.sflag [#allocation6], 1
    %633 = vsyncpa %s632, 1
    %634 = vsyncpa [#allocation4], 1
    %s635 = scalar_lea.sflag [#allocation4], 1
    %636 = vsyncpa %s635, 1
    %637 = vsyncpa [#allocation10], 1
    %s638 = scalar_lea.sflag [#allocation10], 1
    %639 = vsyncpa %s638, 1

</llo_original>
